<compile_context>
chip_gen: v7x
topology: tpu7x:2x2x1
jax: 0.10.0
libtpu: 0.0.40
codegen_flags: <defaults>
</compile_context>

<pallas_src>
import functools
import math

import jax
import jax.numpy as jnp
from jax.experimental import pallas as pl
from jax.experimental.pallas import tpu as pltpu


# ---------------------------------------------------------------------------
# Kernels
# ---------------------------------------------------------------------------

def _ada_rms_norm_kernel_plain(scale_ref, x_ref, o_ref, *, eps):
    """Plain path (channel dim already lane-dense, no folding).

    scale_ref: (Nb, 1, C) f32   precomputed cond @ W + 1 for this batch group
    x_ref:     (Nb, T, C)       spatial tile
    o_ref:     (Nb, T, C)
    """
    x = x_ref[...]
    xf = x.astype(jnp.float32)
    mean_sq = jnp.mean(xf * xf, axis=-1, keepdims=True)            # (Nb, T, 1)
    s = (scale_ref[...] * jax.lax.rsqrt(mean_sq + eps)).astype(x.dtype)
    o_ref[...] = x * s


def _ada_rms_norm_kernel_fold(scale_ref, seg_ref, x_ref, o_ref, *, eps):
    """Lane-folded path: k original rows packed into each lane row (L = k*C).

    scale_ref: (Nb, 1, L) f32   scale tiled k times along channels
    seg_ref:   (L, L)     f32   block-diagonal (per C-segment) averaging matrix
    x_ref:     (Nb, T, L)       folded spatial tile
    o_ref:     (Nb, T, L)

    mean over each original C-row == segmented mean within the lane dim, done as
    one small MXU matmul (result is already broadcast back across the segment).
    """
    x = x_ref[...]
    nb, t, l = x.shape
    xf = x.astype(jnp.float32)
    xsq = (xf * xf).reshape(nb * t, l)                              # trivial merge
    mean_sq = jnp.dot(xsq, seg_ref[...],
                      preferred_element_type=jnp.float32).reshape(nb, t, l)
    s = (scale_ref[...] * jax.lax.rsqrt(mean_sq + eps)).astype(x.dtype)
    o_ref[...] = x * s


# ---------------------------------------------------------------------------
# Blocking heuristics
# ---------------------------------------------------------------------------

def _tpu_target_params():
    """(target block bytes, physical VMEM bytes, minimum grid steps)."""
    target = 2 << 20
    vmem_phys = 64 << 20      # conservative default (v7x-class)
    min_steps = 2             # safe everywhere; required for v7x's 2 TensorCores
    try:
        info = pltpu.get_tpu_info()
        vmem_phys = int(getattr(info, "vmem_capacity_bytes", vmem_phys))
        if vmem_phys <= (64 << 20):
            # v7x-class: 64 MiB VMEM / TC, 2 TCs, ~3.2 TB/s HBM -> bigger tiles,
            # always give both cores work.
            target, min_steps = 4 << 20, 2
        else:
            # v5e / v6e: 128 MiB VMEM, single TensorCore.
            target, min_steps = 2 << 20, 1
    except Exception:
        pass
    return target, vmem_phys, min_steps


def _choose_blocking(N, Sp, L, itemsize, *, target_bytes, min_steps, spatial_tile):
    """Pick (Nb batch rows per step, T spatial rows per step)."""
    sub = max(8, 32 // itemsize)          # sublane packing: f32->8, bf16->16, int8->32
    row_bytes = L * itemsize
    slab_bytes = Sp * row_bytes           # one batch element's folded slab

    if spatial_tile is not None:
        T = int(spatial_tile)
        T = Sp if T >= Sp else max(sub, (T // sub) * sub)
        Nb = 1
    elif slab_bytes >= target_bytes:
        # Big feature map: tile the spatial axis of a single batch element.
        Nb = 1
        T = (int(target_bytes) // row_bytes // sub) * sub
        T = min(max(T, sub), Sp)
        if Sp % T != 0:
            # Prefer a divisor of Sp (avoid a heavily-masked final partial tile),
            # but never shrink below half the target tile.
            cand = (T // sub) * sub
            lo = max(sub, T // 2)
            while cand >= lo:
                if Sp % cand == 0:
                    T = cand
                    break
                cand -= sub
    else:
        # Small feature map: take the whole spatial extent and group batch rows
        # so the ~0.35 µs/step fixed overhead is amortized.
        T = Sp
        Nb = max(1, min(N, int(target_bytes) // max(1, slab_bytes)))
        if Nb > 1 and Sp % sub != 0:
            Nb = 1  # keep the in-kernel (Nb, T, L)->(Nb*T, L) merge layout-trivial

    # Guarantee >= min_steps grid steps (v7x: both TensorCores engaged).
    def _steps():
        return pl.cdiv(N, Nb) * pl.cdiv(Sp, T)

    while _steps() < min_steps:
        if Nb > 1:
            Nb = pl.cdiv(Nb, 2)
        elif T > sub:
            T = max(sub, ((T // 2) // sub) * sub)
        else:
            break
    return Nb, T


# ---------------------------------------------------------------------------
# Wrapper
# ---------------------------------------------------------------------------

def ada_rms_norm(x, cond, weight, eps=1e-6, spatial_tile=None, target_block_bytes=None):
    """AdaRMSNorm forward.

    x:      [N, ..., C] channels-last (4D or 5D per the module)
    cond:   [N, Fc]
    weight: [Fc, C]  (== torch nn.Linear.weight.T; zero-init in the module)
    """
    if x.ndim < 3:
        raise ValueError("expected channels-last input with at least one spatial dim")
    orig_shape = x.shape
    N = x.shape[0]
    C = x.shape[-1]
    S = 1
    for d in x.shape[1:-1]:
        S *= d

    Fc = cond.shape[-1]
    assert cond.shape == (N, Fc)
    assert weight.shape == (Fc, C)

    # --- Hoisted conditioning: one tiny XLA matmul, float32 (matches torch's
    # promotion inside rms_norm; slightly more precise than a bf16 nn.Linear).
    scale = jnp.dot(cond.astype(jnp.float32), weight.astype(jnp.float32),
                    preferred_element_type=jnp.float32) + 1.0          # (N, C)

    # --- Lane-density folding: pack k spatial rows into the lane dim so the
    # per-step DMA/store is a multiple of 128 lanes. k = lcm(C, 128) / C.
    k = 128 // math.gcd(C, 128)
    L = C * k
    fold = (k > 1) and (S % k == 0) and (L <= 512)
    if not fold:
        k, L = 1, C
        # TODO(synk): when C % 128 != 0 and folding is not possible (S % k != 0 or
        # L too large), stores are masked (vst.msk); production configs should use
        # C that is a multiple of 128 for full lane density.
    Sp = S // k

    x2 = x.reshape(N, Sp, L)                      # row-major reshape: free
    if fold:
        scale_b = jnp.tile(scale, (1, k))         # lane j -> channel j % C
    else:
        scale_b = scale
    scale_b = scale_b.reshape(N, 1, L)            # (N, 1, L): leading dim is blockable

    # --- Blocking.
    target_default, vmem_phys, min_steps = _tpu_target_params()
    target_bytes = int(target_block_bytes) if target_block_bytes is not None else target_default
    itemsize = x.dtype.itemsize
    Nb, T = _choose_blocking(N, Sp, L, itemsize,
                             target_bytes=target_bytes,
                             min_steps=min_steps,
                             spatial_tile=spatial_tile)
    grid = (pl.cdiv(N, Nb), pl.cdiv(Sp, T))

    # --- VMEM budget: in + out blocks double-buffered + f32 temporaries + headroom,
    # capped comfortably below the chip's physical VMEM.
    block_bytes = Nb * T * L * itemsize
    f32_temp_bytes = 3 * Nb * T * L * 4
    vmem_cap = max(32 << 20, vmem_phys - (16 << 20))
    vmem_limit = int(min(vmem_cap, max(32 << 20,
                                       4 * block_bytes + f32_temp_bytes + (4 << 20))))

    # --- BlockSpecs.  Grid order: batch group outer, spatial inner, so the scale
    # (and seg-matrix) block indices are constant across inner steps (no re-DMA).
    scale_spec = pl.BlockSpec((Nb, 1, L), lambda n, s: (n, 0, 0))
    x_spec = pl.BlockSpec((Nb, T, L), lambda n, s: (n, s, 0))
    out_spec = pl.BlockSpec((Nb, T, L), lambda n, s: (n, s, 0))

    if fold:
        # Block-diagonal segmented-mean matrix: seg[i, j] = (i//C == j//C) / C.
        lane = jnp.arange(L, dtype=jnp.int32)
        seg = jnp.where(lane[:, None] // C == lane[None, :] // C,
                        jnp.float32(1.0 / C), jnp.float32(0.0))
        kernel = functools.partial(_ada_rms_norm_kernel_fold, eps=eps)
        in_specs = [scale_spec, pl.BlockSpec((L, L), lambda n, s: (0, 0)), x_spec]
        args = (scale_b, seg, x2)
    else:
        kernel = functools.partial(_ada_rms_norm_kernel_plain, eps=eps)
        in_specs = [scale_spec, x_spec]
        args = (scale_b, x2)

    out = pl.pallas_call(
        kernel,
        out_shape=jax.ShapeDtypeStruct((N, Sp, L), x.dtype),
        grid_spec=pltpu.PrefetchScalarGridSpec(
            num_scalar_prefetch=0,
            grid=grid,
            in_specs=in_specs,
            out_specs=out_spec,
        ),
        compiler_params=pltpu.CompilerParams(
            dimension_semantics=("parallel", "parallel"),
            vmem_limit_bytes=vmem_limit,
        ),
    )(*args)

    return out.reshape(orig_shape)


# ---------------------------------------------------------------------------
# Pure-JAX reference (mirrors the PyTorch module)
# ---------------------------------------------------------------------------

def ada_rms_norm_ref(x, cond, weight, eps=1e-6):
    scale = cond.astype(jnp.float32) @ weight.astype(jnp.float32) + 1.0   # (N, C)
    extra = (1,) * (x.ndim - 2)
    scale = scale.reshape(scale.shape[0], *extra, scale.shape[-1])
    xf = x.astype(jnp.float32)
    mean_sq = jnp.mean(xf * xf, axis=-1, keepdims=True)
    s = (scale * jax.lax.rsqrt(mean_sq + eps)).astype(x.dtype)
    return x * s


if __name__ == "__main__":
    key = jax.random.PRNGKey(0)
    ks = jax.random.split(key, 6)

    N, H, W = 2, 16, 16
    features = 32            # channel / feature dim (last axis)
    cond_features = 16
    eps = 1e-6

    x = jax.random.normal(ks[0], (N, H, W, features), dtype=jnp.float32)
    cond = jax.random.normal(ks[1], (N, cond_features), dtype=jnp.float32)
    # The module zero-inits the linear (scale == 1 at init); use small non-zero
    # weights so the conditioning path is actually exercised.
    weight = 0.05 * jax.random.normal(ks[2], (cond_features, features), dtype=jnp.float32)

    # 4D, C=32 -> lane-folded path (k=4, L=128), batch-grouped blocking.
    out = jax.block_until_ready(ada_rms_norm(x, cond, weight, eps=eps))
    ref = ada_rms_norm_ref(x, cond, weight, eps=eps)
    assert out.shape == x.shape and out.dtype == x.dtype
    assert jnp.allclose(out, ref, atol=1e-5, rtol=1e-5), "4D (folded) mismatch"

    # Same, forcing multiple spatial tiles per batch element.
    out_t = jax.block_until_ready(ada_rms_norm(x, cond, weight, eps=eps, spatial_tile=16))
    assert jnp.allclose(out_t, ref, atol=1e-5, rtol=1e-5), "tiled mismatch"

    # C=128 -> plain lane-dense path (no folding), multi-batch blocking.
    x128 = jax.random.normal(ks[3], (N, 8, 8, 128), dtype=jnp.float32)
    w128 = 0.05 * jax.random.normal(ks[4], (cond_features, 128), dtype=jnp.float32)
    out128 = jax.block_until_ready(ada_rms_norm(x128, cond, w128, eps=eps))
    ref128 = ada_rms_norm_ref(x128, cond, w128, eps=eps)
    assert jnp.allclose(out128, ref128, atol=1e-5, rtol=1e-5), "C=128 mismatch"

    # 5D (D, H, W spatial) branch with bf16 activations (exercises bf16 sublane rounding).
    x5 = jax.random.normal(ks[5], (N, 4, 8, 8, features), dtype=jnp.float32).astype(jnp.bfloat16)
    out5 = jax.block_until_ready(ada_rms_norm(x5, cond, weight, eps=eps))
    ref5 = ada_rms_norm_ref(x5, cond, weight, eps=eps)
    assert out5.shape == x5.shape and out5.dtype == x5.dtype
    assert jnp.allclose(out5.astype(jnp.float32), ref5.astype(jnp.float32),
                        atol=3e-2, rtol=3e-2), "5D bf16 mismatch"

    print("KERNEL_OK")
</pallas_src>

<mosaic_0001>
module attributes {stable_mosaic.version = 11 : i64} {
  func.func @_ada_rms_norm_kernel_fold(%arg0: i32, %arg1: i32, %arg2: memref<1x1x128xf32, #tpu.memory_space<vmem>>, %arg3: memref<128x128xf32, #tpu.memory_space<vmem>>, %arg4: memref<1x64x128xf32, #tpu.memory_space<vmem>>, %arg5: memref<1x64x128xf32, #tpu.memory_space<vmem>>) attributes {dimension_semantics = [#tpu.dimension_semantics<parallel>, #tpu.dimension_semantics<parallel>], iteration_bounds = array<i64: 2, 1>, scalar_prefetch = 0 : i64, scratch_operands = 0 : i64, tpu.core_type = #tpu.core_type<tc>, window_params = [{transform_indices = @transform_0, window_bounds = array<i64: 1, 1, 128>}, {pipeline_mode = #tpu.pipeline_mode<synchronous>, transform_indices = @transform_1, window_bounds = array<i64: 128, 128>}, {transform_indices = @transform_2, window_bounds = array<i64: 1, 64, 128>}, {transform_indices = @transform_3, window_bounds = array<i64: 1, 64, 128>}]} {
    %c0 = arith.constant 0 : index
    %c0_0 = arith.constant 0 : index
    %c0_1 = arith.constant 0 : index
    %0 = vector.load %arg4[%c0, %c0_0, %c0_1] : memref<1x64x128xf32, #tpu.memory_space<vmem>>, vector<1x64x128xf32>
    %1 = arith.mulf %0, %0 : vector<1x64x128xf32>
    %2 = vector.shape_cast %1 : vector<1x64x128xf32> to vector<64x128xf32>
    %c0_2 = arith.constant 0 : index
    %c0_3 = arith.constant 0 : index
    %3 = vector.load %arg3[%c0_2, %c0_3] : memref<128x128xf32, #tpu.memory_space<vmem>>, vector<128x128xf32>
    %cst = arith.constant dense<0.000000e+00> : vector<64x128xf32>
    %4 = tpu.matmul %2, %3, %cst {dimension_numbers = #tpu.dot_dimension_numbers<[1], [0], [0], [1], [0, 0, 1, 1], [], []>} : vector<64x128xf32>, vector<128x128xf32>, vector<64x128xf32> -> vector<64x128xf32>
    %5 = vector.shape_cast %4 : vector<64x128xf32> to vector<1x64x128xf32>
    %c0_4 = arith.constant 0 : index
    %c0_5 = arith.constant 0 : index
    %c0_6 = arith.constant 0 : index
    %6 = vector.load %arg2[%c0_4, %c0_5, %c0_6] : memref<1x1x128xf32, #tpu.memory_space<vmem>>, vector<1x1x128xf32>
    %cst_7 = arith.constant 9.99999997E-7 : f32
    %7 = vector.broadcast %cst_7 : f32 to vector<1x64x128xf32>
    %8 = arith.addf %5, %7 : vector<1x64x128xf32>
    %9 = math.rsqrt %8 : vector<1x64x128xf32>
    %10 = vector.broadcast %6 : vector<1x1x128xf32> to vector<1x64x128xf32>
    %11 = arith.mulf %10, %9 : vector<1x64x128xf32>
    %12 = arith.mulf %0, %11 : vector<1x64x128xf32>
    %c0_8 = arith.constant 0 : index
    %c0_9 = arith.constant 0 : index
    %c0_10 = arith.constant 0 : index
    %13 = vector.load %arg5[%c0_8, %c0_9, %c0_10] : memref<1x64x128xf32, #tpu.memory_space<vmem>>, vector<1x64x128xf32>
    tpu.vector_store %arg5[%c0_8, %c0_9, %c0_10], %12 {strides = array<i32>} : memref<1x64x128xf32, #tpu.memory_space<vmem>>, vector<1x64x128xf32>,
    return
  }
  func.func @transform_0(%arg0: i32, %arg1: i32) -> (i32, i32, i32) {
    %c0_i32 = arith.constant 0 : i32
    %c0_i32_0 = arith.constant 0 : i32
    %c0_i32_1 = arith.constant 0 : i32
    return %arg0, %c0_i32, %c0_i32_0 : i32, i32, i32
  }
  func.func @transform_1(%arg0: i32, %arg1: i32) -> (i32, i32) {
    %c0_i32 = arith.constant 0 : i32
    %c0_i32_0 = arith.constant 0 : i32
    %c0_i32_1 = arith.constant 0 : i32
    return %c0_i32, %c0_i32_0 : i32, i32
  }
  func.func @transform_2(%arg0: i32, %arg1: i32) -> (i32, i32, i32) {
    %c0_i32 = arith.constant 0 : i32
    %c0_i32_0 = arith.constant 0 : i32
    return %arg0, %arg1, %c0_i32 : i32, i32, i32
  }
  func.func @transform_3(%arg0: i32, %arg1: i32) -> (i32, i32, i32) {
    %c0_i32 = arith.constant 0 : i32
    %c0_i32_0 = arith.constant 0 : i32
    return %arg0, %arg1, %c0_i32 : i32, i32, i32
  }
}

</mosaic_0001>

<llo_original>
// kernel: tpu_custom_call.1
$region0: #{tpu_custom_call.1}
  #allocation0 [shape = 'u32[]', space=smem, size = 0x4, offset = 0x4, fixed_abs, tag = 'smem constant byte address 0x4 - core index']
  #allocation1 [shape = 'u32[144,128]{1,0:T(1,128)}', space=vmem, size = 0x12000, scoped, tag = 'internal scratch']
  %s0 = inlined_call_operand.hbm [shape: f32[2,1,128], index: 0, kind: input, shape index: {}]
  %s1 = inlined_call_operand.hbm [shape: f32[128,128], index: 1, kind: input, shape index: {}]
  %s2 = inlined_call_operand.hbm [shape: f32[2,64,128], index: 2, kind: input, shape index: {}]
  %s3 = inlined_call_operand.hbm [shape: f32[2,64,128], index: 3, kind: output, shape index: {}]
  %s4 = sld [smem:[#allocation0]]
  $region57: #{tpu_custom_call.1} parent=0
    _
  %s6 = ssub.s32 1, %s4
  %s7 = scalar_select 0, %s6, %s4
  $region1: #{tpu_custom_call.1} parent=0
    #allocation2 [shape = 'u8[1024]{0}', space=vmem, size = 0x400, scoped, tag = 'input window, operand 0']
    #allocation3 [shape = 's32[2]{0}', space=sflag, size = 0x8, scoped, tag = 'scoped memory for tpu_custom_call.1']
    #allocation4 [shape = 's32[2]{0}', space=sflag, size = 0x8, scoped, tag = 'scoped memory for tpu_custom_call.1']
    #allocation5 [shape = 'u8[65536]{0}', space=vmem, size = 0x10000, scoped, tag = 'input window, operand 1, single buffered']
    #allocation6 [shape = 's32[1]{0}', space=sflag, size = 0x4, scoped, tag = 'scoped memory for tpu_custom_call.1']
    #allocation7 [shape = 'u8[65536]{0}', space=vmem, size = 0x10000, scoped, tag = 'input window, operand 2']
    #allocation8 [shape = 'u8[65536]{0}', space=vmem, size = 0x10000, scoped, tag = 'output window, operand 0']
    %8 = vsyncpa [#allocation3], 0
    %s9 = scalar_lea.sflag [#allocation3], 1
    %10 = vsyncpa %s9, 0
    %11 = vsyncpa [#allocation6], 0
    %12 = vsyncpa [#allocation4], 0
    %s13 = scalar_lea.sflag [#allocation4], 1
    %14 = vsyncpa %s13, 0
    loop: start=0, step=1, limit=4
    $region2: #{tpu_custom_call.1} parent=1 // loop_pre_header
      _
    $region3: #{tpu_custom_call.1} parent=1 // loop_header
      %s16 = sphi 0, %s20
      %p17 = scmp.ge.s32.totalorder %s16, 4
      %s23 = sphi 0, %s35
      %s24 = sphi 0, %s31
      %s25 = sphi 0, %s23
      %s26 = sphi 0, %s24
      %s27 = sphi 0, %s25
      %s28 = sphi 0, %s26
      %s38 = sphi 0, %s40
      %s41 = sphi 0, %s38
      %s42 = sphi 0, %s41
      %s58 = sphi 0, %s42
      %s62 = sphi 0, %s62
      %s64 = sphi 0, %s62
      %s65 = sphi 0, %s64
      %s79 = sphi 0, %s65
      %s87 = sphi 0, %s89
      %s90 = sphi 0, %s87
      %s91 = sphi 0, %s90
      %s107 = sphi 0, %s91
      %s115 = sphi 0, %s117
      %s118 = sphi 0, %s115
      %s119 = sphi 0, %s118
      %s135 = sphi 0, %s119
    $region4: #{tpu_custom_call.1} parent=1 // loop_header_branch
      %19 = sbr.rel (%p17) target = $region8
    $region5: #{tpu_custom_call.1} parent=1 // loop_body
      %s21 = ssub.s32 %s16, 1
      %s22 = ssub.s32 %s16, 2
      %s29 = sadd.s32 1, %s24
      %p30 = scmp.ge.s32.totalorder %s29, 1
      %s31 = scalar_select %p30, 0, %s29
      %s32 = sadd.s32 1, %s23
      %s33 = scalar_select %p30, %s32, %s23
      %p34 = scmp.ge.s32.totalorder %s33, 2
      %s35 = scalar_select %p34, 0, %s33
      %s36 = ssub.s32 %s23, %s35
      %p37 = scmp.eq.s32.totalorder %s36, 0
      %s39 = sadd.s32 %s38, 1
      %s40 = scalar_select %p37, %s38, %s39
      %p43 = pneg %p37
      %p44 = scmp.eq.s32.totalorder %s16, 1
      %p45 = por %p43, %p44
      %p46 = scmp.ne.s32.totalorder %s38, %s41
      %p47 = scmp.eq.s32.totalorder %s16, 0
      %p48 = por %p46, %p47
      %p49 = scmp.ne.s32.totalorder %s38, %s41
      %p50 = scmp.eq.s32.totalorder %s21, 1
      %p51 = por %p49, %p50
      %p52 = scmp.ne.s32.totalorder %s41, %s42
      %p53 = scmp.eq.s32.totalorder %s21, 0
      %p54 = por %p52, %p53
      %p55 = scmp.ne.s32.totalorder %s41, %s42
      %p56 = scmp.eq.s32.totalorder %s22, 1
      %p57 = por %p55, %p56
      %p59 = scmp.ne.s32.totalorder %s42, %s58
      %p60 = scmp.eq.s32.totalorder %s22, 0
      %p61 = por %p59, %p60
      %s63 = sadd.s32 %s62, 1
      %p66 = scmp.eq.s32.totalorder %s16, 1
      %p67 = scmp.ne.s32.totalorder %s62, %s64
      %p68 = scmp.eq.s32.totalorder %s16, 0
      %p69 = por %p67, %p68
      %p70 = scmp.ne.s32.totalorder %s62, %s64
      %p71 = scmp.eq.s32.totalorder %s21, 1
      %p72 = por %p70, %p71
      %p73 = scmp.ne.s32.totalorder %s64, %s65
      %p74 = scmp.eq.s32.totalorder %s21, 0
      %p75 = por %p73, %p74
      %p76 = scmp.ne.s32.totalorder %s64, %s65
      %p77 = scmp.eq.s32.totalorder %s22, 1
      %p78 = por %p76, %p77
      %p80 = scmp.ne.s32.totalorder %s65, %s79
      %p81 = scmp.eq.s32.totalorder %s22, 0
      %p82 = por %p80, %p81
      %s83 = ssub.s32 %s23, %s35
      %s84 = ssub.s32 %s24, %s31
      %s85 = sor.u32 %s83, %s84
      %p86 = scmp.eq.s32.totalorder %s85, 0
      %s88 = sadd.s32 %s87, 1
      %s89 = scalar_select %p86, %s87, %s88
      %p92 = pneg %p86
      %p93 = scmp.eq.s32.totalorder %s16, 1
      %p94 = por %p92, %p93
      %p95 = scmp.ne.s32.totalorder %s87, %s90
      %p96 = scmp.eq.s32.totalorder %s16, 0
      %p97 = por %p95, %p96
      %p98 = scmp.ne.s32.totalorder %s87, %s90
      %p99 = scmp.eq.s32.totalorder %s21, 1
      %p100 = por %p98, %p99
      %p101 = scmp.ne.s32.totalorder %s90, %s91
      %p102 = scmp.eq.s32.totalorder %s21, 0
      %p103 = por %p101, %p102
      %p104 = scmp.ne.s32.totalorder %s90, %s91
      %p105 = scmp.eq.s32.totalorder %s22, 1
      %p106 = por %p104, %p105
      %p108 = scmp.ne.s32.totalorder %s91, %s107
      %p109 = scmp.eq.s32.totalorder %s22, 0
      %p110 = por %p108, %p109
      %s111 = ssub.s32 %s23, %s35
      %s112 = ssub.s32 %s24, %s31
      %s113 = sor.u32 %s111, %s112
      %p114 = scmp.eq.s32.totalorder %s113, 0
      %s116 = sadd.s32 %s115, 1
      %s117 = scalar_select %p114, %s115, %s116
      %p120 = pneg %p114
      %p121 = scmp.eq.s32.totalorder %s16, 1
      %p122 = por %p120, %p121
      %p123 = scmp.ne.s32.totalorder %s115, %s118
      %p124 = scmp.eq.s32.totalorder %s16, 0
      %p125 = por %p123, %p124
      %p126 = scmp.ne.s32.totalorder %s115, %s118
      %p127 = scmp.eq.s32.totalorder %s21, 1
      %p128 = por %p126, %p127
      %p129 = scmp.ne.s32.totalorder %s118, %s119
      %p130 = scmp.eq.s32.totalorder %s21, 0
      %p131 = por %p129, %p130
      %p132 = scmp.ne.s32.totalorder %s118, %s119
      %p133 = scmp.eq.s32.totalorder %s22, 1
      %p134 = por %p132, %p133
      %p136 = scmp.ne.s32.totalorder %s119, %s135
      %p137 = scmp.eq.s32.totalorder %s22, 0
      %p138 = por %p136, %p137
      %p139 = scmp.le.s32.totalorder 1, %s16
      %p140 = scmp.lt.s32.totalorder %s16, 3
      %p141 = pnand %p139, %p140
      %p142 = pneg %p141
      // Predicated region
      $region9: #{tpu_custom_call.1} parent=5 // pred_check
        _
      $region10: #{tpu_custom_call.1} parent=5 // pred_check_branch
        %144 = sbr.rel (%p141) target = $region12
      $region11: #{tpu_custom_call.1} parent=5 // pred_region
        %s145 = ssub.s32 %s16, 1
        // Predicated region
        $region13: #{tpu_custom_call.1} parent=11 // pred_check
          %p146 = pneg %p75
        $region14: #{tpu_custom_call.1} parent=11 // pred_check_branch
          %148 = sbr.rel (%p146) target = $region16
        $region15: #{tpu_custom_call.1} parent=11 // pred_region
          %s150 = ssub.s32 2048, 2048
          %151 = vsyncadd [#allocation6], %s150
          %s152 = sshll.u32 [#allocation5], 4
          %s153 = int_to_ptr.vmem [resolvable:$true] %s152
          %158 = dma.hbm_to_vmem [thread:$0]  %s1, 2048, %s153, [#allocation6], 128, 128, 8
        $region16: #{tpu_custom_call.1} parent=11 // pred_fallthru
          _
      $region12: #{tpu_custom_call.1} parent=5 // pred_fallthru
        _
      %p159 = scmp.lt.s32.totalorder %s16, 2
      // Predicated region
      $region17: #{tpu_custom_call.1} parent=5 // pred_check
        %p160 = pneg %p159
      $region18: #{tpu_custom_call.1} parent=5 // pred_check_branch
        %162 = sbr.rel (%p160) target = $region20
      $region19: #{tpu_custom_call.1} parent=5 // pred_region
        // Predicated region
        $region21: #{tpu_custom_call.1} parent=19 // pred_check
          %p163 = pneg %p48
        $region22: #{tpu_custom_call.1} parent=19 // pred_check_branch
          %165 = sbr.rel (%p163) target = $region24
        $region23: #{tpu_custom_call.1} parent=19 // pred_region
          %s166 = sand.u32 %s16, 1
          %s167 = scalar_lea.sflag [#allocation3], %s166
          %s168 = sand.u32 %s38, 1
          %s169 = scalar_lea.vmem [#allocation2], %s168
          %s171 = ssub.s32 16, 16
          %172 = vsyncadd %s167, %s171
          %s173 = smul.addr %s23, 16
          %s174 = scalar_lea.hbm %s0, %s173
          %s176 = sshll.u32 %s169, 4
          %s177 = int_to_ptr.vmem [resolvable:$true] %s176
          %179 = dma.hbm_to_vmem [thread:$0]  %s174, 16, %s177, %s167
        $region24: #{tpu_custom_call.1} parent=19 // pred_fallthru
          _
        // Predicated region
        $region25: #{tpu_custom_call.1} parent=19 // pred_check
          %p180 = pneg %p97
        $region26: #{tpu_custom_call.1} parent=19 // pred_check_branch
          %182 = sbr.rel (%p180) target = $region28
        $region27: #{tpu_custom_call.1} parent=19 // pred_region
          %s183 = sand.u32 %s16, 1
          %s184 = scalar_lea.sflag [#allocation3], %s183
          %s185 = sand.u32 %s87, 1
          %s186 = smul.addr %s185, 64
          %s187 = scalar_lea.vmem [#allocation7], %s186
          %s188 = smul.u32 8, %s24
          %s190 = ssub.s32 1024, 1024
          %191 = vsyncadd %s184, %s190
          %s192 = smul.addr %s23, 8
          %s193 = sadd.s32 %s188, %s192
          %s194 = smul.addr %s193, 128
          %s195 = scalar_lea.hbm %s2, %s194
          %s196 = sshll.u32 %s187, 4
          %s197 = int_to_ptr.vmem [resolvable:$true] %s196
          %202 = dma.hbm_to_vmem [thread:$0]  %s195, 1024, %s197, %s184, 128, 128, 8
        $region28: #{tpu_custom_call.1} parent=19 // pred_fallthru
          _
      $region20: #{tpu_custom_call.1} parent=5 // pred_fallthru
        _
      %p203 = scmp.le.s32.totalorder 1, %s16
      %p204 = scmp.lt.s32.totalorder %s16, 3
      %p205 = pnand %p203, %p204
      %p206 = pneg %p205
      // Predicated region
      $region29: #{tpu_custom_call.1} parent=5 // pred_check
        _
      $region30: #{tpu_custom_call.1} parent=5 // pred_check_branch
        %208 = sbr.rel (%p205) target = $region32
      $region31: #{tpu_custom_call.1} parent=5 // pred_region
        %s209 = ssub.s32 %s16, 1
        %s210 = sand.u32 %s21, 1
        %s211 = scalar_lea.sflag [#allocation3], %s210
        %s212 = sand.u32 %s41, 1
        %s213 = scalar_lea.vmem [#allocation2], %s212
        // Predicated region
        $region33: #{tpu_custom_call.1} parent=31 // pred_check
          %p214 = pneg %p54
        $region34: #{tpu_custom_call.1} parent=31 // pred_check_branch
          %216 = sbr.rel (%p214) target = $region36
        $region35: #{tpu_custom_call.1} parent=31 // pred_region
          %217 = dma.done %s211, 16
        $region36: #{tpu_custom_call.1} parent=31 // pred_fallthru
          _
        // Predicated region
        $region37: #{tpu_custom_call.1} parent=31 // pred_check
          %p218 = pneg %p75
        $region38: #{tpu_custom_call.1} parent=31 // pred_check_branch
          %220 = sbr.rel (%p218) target = $region40
        $region39: #{tpu_custom_call.1} parent=31 // pred_region
          %221 = dma.done [#allocation6], 2048
        $region40: #{tpu_custom_call.1} parent=31 // pred_fallthru
          _
        %s222 = sand.u32 %s21, 1
        %s223 = scalar_lea.sflag [#allocation3], %s222
        %s224 = sand.u32 %s90, 1
        %s225 = smul.addr %s224, 64
        %s226 = scalar_lea.vmem [#allocation7], %s225
        // Predicated region
        $region41: #{tpu_custom_call.1} parent=31 // pred_check
          %p227 = pneg %p103
        $region42: #{tpu_custom_call.1} parent=31 // pred_check_branch
          %229 = sbr.rel (%p227) target = $region44
        $region43: #{tpu_custom_call.1} parent=31 // pred_region
          %230 = dma.done %s223, 1024
        $region44: #{tpu_custom_call.1} parent=31 // pred_fallthru
          _
        %s231 = sand.u32 %s21, 1
        %s232 = scalar_lea.sflag [#allocation3], %s231
        %s233 = sand.u32 %s41, 1
        %s234 = scalar_lea.vmem [#allocation2], %s233
        %p235 = pneg %p54
        %p236 = pneg %p51
        %p237 = pneg %p75
        %p238 = pneg %p72
        %s239 = sand.u32 %s21, 1
        %s240 = scalar_lea.sflag [#allocation3], %s239
        %s241 = sand.u32 %s90, 1
        %s242 = smul.addr %s241, 64
        %s243 = scalar_lea.vmem [#allocation7], %s242
        %p244 = pneg %p103
        %p245 = pneg %p100
        %p246 = pneg %p131
        %p247 = pneg %p128
        %s248 = sand.u32 %s118, 1
        %s249 = scalar_lea.sflag [#allocation4], %s248
        %s250 = sand.u32 %s118, 1
        %s251 = smul.addr %s250, 64
        %s252 = scalar_lea.vmem [#allocation8], %s251
        %s253 = smul.u32 8, %s26
        %s254 = smul.u32 8, %s26
        %v255 = vld [vmem:[%s226] sm:$0xff]
        %v256 = vld [vmem:[%s226 + $0x8] sm:$0xff]
        %v257 = vld [vmem:[%s226 + $0x10] sm:$0xff]
        %v258 = vld [vmem:[%s226 + $0x18] sm:$0xff]
        %v259 = vld [vmem:[%s226 + $0x20] sm:$0xff]
        %v260 = vld [vmem:[%s226 + $0x28] sm:$0xff]
        %v261 = vld [vmem:[%s226 + $0x30] sm:$0xff]
        %v262 = vld [vmem:[%s226 + $0x38] sm:$0xff]
        %v263 = vmul.f32 %v255, %v255
        %v264 = vmul.f32 %v256, %v256
        %v265 = vmul.f32 %v257, %v257
        %v266 = vmul.f32 %v258, %v258
        %v267 = vmul.f32 %v259, %v259
        %v268 = vmul.f32 %v260, %v260
        %v269 = vmul.f32 %v261, %v261
        %v270 = vmul.f32 %v262, %v262
        %v271 = vld [vmem:[#allocation5] sm:$0xff]
        %v272 = vld [vmem:[#allocation5 + $0x8] sm:$0xff]
        %v273 = vld [vmem:[#allocation5 + $0x10] sm:$0xff]
        %v274 = vld [vmem:[#allocation5 + $0x18] sm:$0xff]
        %v275 = vld [vmem:[#allocation5 + $0x20] sm:$0xff]
        %v276 = vld [vmem:[#allocation5 + $0x28] sm:$0xff]
        %v277 = vld [vmem:[#allocation5 + $0x30] sm:$0xff]
        %v278 = vld [vmem:[#allocation5 + $0x38] sm:$0xff]
        %v279 = vld [vmem:[#allocation5 + $0x40] sm:$0xff]
        %v280 = vld [vmem:[#allocation5 + $0x48] sm:$0xff]
        %v281 = vld [vmem:[#allocation5 + $0x50] sm:$0xff]
        %v282 = vld [vmem:[#allocation5 + $0x58] sm:$0xff]
        %v283 = vld [vmem:[#allocation5 + $0x60] sm:$0xff]
        %v284 = vld [vmem:[#allocation5 + $0x68] sm:$0xff]
        %v285 = vld [vmem:[#allocation5 + $0x70] sm:$0xff]
        %v286 = vld [vmem:[#allocation5 + $0x78] sm:$0xff]
        %287 = vmatprep.subr.mxu0 0.0
        %288 = vmatpush1.msra.mxu0 %v271
        %289 = vmatprep.subr.mxu0 0.0
        %290 = vmatpush1.msra.mxu0 %v272
        %291 = vmatprep.subr.mxu0 0.0
        %292 = vmatpush1.msra.mxu0 %v273
        %293 = vmatprep.subr.mxu0 0.0
        %294 = vmatpush1.msra.mxu0 %v274
        %295 = vmatprep.subr.mxu0 0.0
        %296 = vmatpush1.msra.mxu0 %v275
        %297 = vmatprep.subr.mxu0 0.0
        %298 = vmatpush1.msra.mxu0 %v276
        %299 = vmatprep.subr.mxu0 0.0
        %300 = vmatpush1.msra.mxu0 %v277
        %301 = vmatprep.subr.mxu0 0.0
        %302 = vmatpush1.msra.mxu0 %v278
        %303 = vmatprep.subr.mxu0 0.0
        %304 = vmatpush1.msra.mxu0 %v279
        %305 = vmatprep.subr.mxu0 0.0
        %306 = vmatpush1.msra.mxu0 %v280
        %307 = vmatprep.subr.mxu0 0.0
        %308 = vmatpush1.msra.mxu0 %v281
        %309 = vmatprep.subr.mxu0 0.0
        %310 = vmatpush1.msra.mxu0 %v282
        %311 = vmatprep.subr.mxu0 0.0
        %312 = vmatpush1.msra.mxu0 %v283
        %313 = vmatprep.subr.mxu0 0.0
        %314 = vmatpush1.msra.mxu0 %v284
        %315 = vmatprep.subr.mxu0 0.0
        %316 = vmatpush1.msra.mxu0 %v285
        %317 = vmatprep.subr.mxu0 0.0
        %318 = vmatpush1.msra.mxu0 %v286
        %319 = vmatprep.subr.mxu0 0.0
        %320 = vmatpush1.msra.mxu0 0.0
        %321 = vmatprep.subr.mxu0 0.0
        %322 = vmatpush1.msra.mxu0 0.0
        %323 = vmatprep.subr.mxu0 0.0
        %324 = vmatpush1.msra.mxu0 0.0
        %325 = vmatprep.subr.mxu0 0.0
        %326 = vmatpush1.msra.mxu0 0.0
        %327 = vmatprep.subr.mxu0 0.0
        %328 = vmatpush1.msra.mxu0 0.0
        %329 = vmatprep.subr.mxu0 0.0
        %330 = vmatpush1.msra.mxu0 0.0
        %331 = vmatprep.subr.mxu0 0.0
        %332 = vmatpush1.msra.mxu0 0.0
        %333 = vmatprep.subr.mxu0 0.0
        %334 = vmatpush1.msra.mxu0 0.0
        %335 = vmatprep.subr.mxu0 0.0
        %336 = vmatpush1.msra.mxu0 0.0
        %337 = vmatprep.subr.mxu0 0.0
        %338 = vmatpush1.msra.mxu0 0.0
        %339 = vmatprep.subr.mxu0 0.0
        %340 = vmatpush1.msra.mxu0 0.0
        %341 = vmatprep.subr.mxu0 0.0
        %342 = vmatpush1.msra.mxu0 0.0
        %343 = vmatprep.subr.mxu0 0.0
        %344 = vmatpush1.msra.mxu0 0.0
        %345 = vmatprep.subr.mxu0 0.0
        %346 = vmatpush1.msra.mxu0 0.0
        %347 = vmatprep.subr.mxu0 0.0
        %348 = vmatpush1.msra.mxu0 0.0
        %349 = vmatprep.subr.mxu0 0.0
        %350 = vmatpush1.msra.mxu0 0.0
        %351 = vmatprep.mubr.f32.mxu0 0.0
        %352 = vmatmul.mubr.f32.gmra.mrb[0].mxu0 %v263
        %v353 = vpop.f32.mrb[0].mxu0
        %v354 = vadd.f32 0.0, %v353
        %v355 = vpop.f32.mrb[0].mxu0
        %356 = vmatprep.mubr.f32.mxu0 0.0
        %357 = vmatmul.mubr.f32.gmra.mrb[0].mxu0 %v264
        %v358 = vpop.f32.mrb[0].mxu0
        %v359 = vadd.f32 0.0, %v358
        %v360 = vpop.f32.mrb[0].mxu0
        %361 = vmatprep.mubr.f32.mxu0 0.0
        %362 = vmatmul.mubr.f32.gmra.mrb[0].mxu0 %v265
        %v363 = vpop.f32.mrb[0].mxu0
        %v364 = vadd.f32 0.0, %v363
        %v365 = vpop.f32.mrb[0].mxu0
        %366 = vmatprep.mubr.f32.mxu0 0.0
        %367 = vmatmul.mubr.f32.gmra.mrb[0].mxu0 %v266
        %v368 = vpop.f32.mrb[0].mxu0
        %v369 = vadd.f32 0.0, %v368
        %v370 = vpop.f32.mrb[0].mxu0
        %371 = vmatprep.mubr.f32.mxu0 0.0
        %372 = vmatmul.mubr.f32.gmra.mrb[0].mxu0 %v267
        %v373 = vpop.f32.mrb[0].mxu0
        %v374 = vadd.f32 0.0, %v373
        %v375 = vpop.f32.mrb[0].mxu0
        %376 = vmatprep.mubr.f32.mxu0 0.0
        %377 = vmatmul.mubr.f32.gmra.mrb[0].mxu0 %v268
        %v378 = vpop.f32.mrb[0].mxu0
        %v379 = vadd.f32 0.0, %v378
        %v380 = vpop.f32.mrb[0].mxu0
        %381 = vmatprep.mubr.f32.mxu0 0.0
        %382 = vmatmul.mubr.f32.gmra.mrb[0].mxu0 %v269
        %v383 = vpop.f32.mrb[0].mxu0
        %v384 = vadd.f32 0.0, %v383
        %v385 = vpop.f32.mrb[0].mxu0
        %386 = vmatprep.mubr.f32.mxu0 0.0
        %387 = vmatmul.mubr.f32.gmra.mrb[0].mxu0 %v270
        %v388 = vpop.f32.mrb[0].mxu0
        %v389 = vadd.f32 0.0, %v388
        %v390 = vpop.f32.mrb[0].mxu0
        %391 = vdwg.mxu0
        %v392 = vld [vmem:[%s213] sm:$0x1]
        %v393 = vadd.f32 %v354, 1e-06
        %v394 = vadd.f32 %v359, 1e-06
        %v395 = vadd.f32 %v364, 1e-06
        %v396 = vadd.f32 %v369, 1e-06
        %v397 = vadd.f32 %v374, 1e-06
        %v398 = vadd.f32 %v379, 1e-06
        %v399 = vadd.f32 %v384, 1e-06
        %v400 = vadd.f32 %v389, 1e-06
        %v401 = vrsqrt.pop %v393
        %v402 = vrsqrt.pop %v394
        %v403 = vrsqrt.pop %v395
        %v404 = vrsqrt.pop %v396
        %v405 = vrsqrt.pop %v397
        %v406 = vrsqrt.pop %v398
        %v407 = vrsqrt.pop %v399
        %v408 = vrsqrt.pop %v400
        %v410 = vlaneseq
        %v411 = vshrl.u32 %v410, 7
        %v412 = vsub.s32 0, %v411
        %v413 = vrot.slane %v392, %v412
        %v415 = vmul.f32 %v413, %v401
        %v416 = vmul.f32 %v413, %v402
        %v417 = vmul.f32 %v413, %v403
        %v418 = vmul.f32 %v413, %v404
        %v419 = vmul.f32 %v413, %v405
        %v420 = vmul.f32 %v413, %v406
        %v421 = vmul.f32 %v413, %v407
        %v422 = vmul.f32 %v413, %v408
        %v423 = vmul.f32 %v255, %v415
        %v424 = vmul.f32 %v256, %v416
        %v425 = vmul.f32 %v257, %v417
        %v426 = vmul.f32 %v258, %v418
        %v427 = vmul.f32 %v259, %v419
        %v428 = vmul.f32 %v260, %v420
        %v429 = vmul.f32 %v261, %v421
        %v430 = vmul.f32 %v262, %v422
        %431 = vst [vmem:[%s252] sm:$0xff] %v423
        %432 = vst [vmem:[%s252 + $0x8] sm:$0xff] %v424
        %433 = vst [vmem:[%s252 + $0x10] sm:$0xff] %v425
        %434 = vst [vmem:[%s252 + $0x18] sm:$0xff] %v426
        %435 = vst [vmem:[%s252 + $0x20] sm:$0xff] %v427
        %436 = vst [vmem:[%s252 + $0x28] sm:$0xff] %v428
        %437 = vst [vmem:[%s252 + $0x30] sm:$0xff] %v429
        %438 = vst [vmem:[%s252 + $0x38] sm:$0xff] %v430
        %s439 = sand.u32 %s118, 1
        %s440 = scalar_lea.sflag [#allocation4], %s439
        %s441 = sand.u32 %s118, 1
        %s442 = smul.addr %s441, 64
        %s443 = scalar_lea.vmem [#allocation8], %s442
        // Predicated region
        $region45: #{tpu_custom_call.1} parent=31 // pred_check
          %p444 = pneg %p128
        $region46: #{tpu_custom_call.1} parent=31 // pred_check_branch
          %446 = sbr.rel (%p444) target = $region48
        $region47: #{tpu_custom_call.1} parent=31 // pred_region
          %s447 = smul.u32 8, %s26
          %s449 = ssub.s32 1024, 1024
          %450 = vsyncadd %s440, %s449
          %s451 = smul.addr %s25, 8
          %s452 = sadd.s32 %s447, %s451
          %s453 = smul.addr %s452, 128
          %s454 = scalar_lea.hbm %s3, %s453
          %s455 = sshll.u32 %s443, 4
          %s456 = int_to_ptr.vmem [resolvable:$true] %s455
          %461 = dma.vmem_to_hbm [thread:$0]  %s456, 1024, %s454, %s440, 128, 128, 8
        $region48: #{tpu_custom_call.1} parent=31 // pred_fallthru
          _
      $region32: #{tpu_custom_call.1} parent=5 // pred_fallthru
        _
      %p462 = scmp.le.s32.totalorder 2, %s16
      // Predicated region
      $region49: #{tpu_custom_call.1} parent=5 // pred_check
        %p463 = pneg %p462
      $region50: #{tpu_custom_call.1} parent=5 // pred_check_branch
        %465 = sbr.rel (%p463) target = $region52
      $region51: #{tpu_custom_call.1} parent=5 // pred_region
        %s466 = ssub.s32 %s16, 2
        // Predicated region
        $region53: #{tpu_custom_call.1} parent=51 // pred_check
          %p467 = pneg %p134
        $region54: #{tpu_custom_call.1} parent=51 // pred_check_branch
          %469 = sbr.rel (%p467) target = $region56
        $region55: #{tpu_custom_call.1} parent=51 // pred_region
          %s470 = sand.u32 %s119, 1
          %s471 = scalar_lea.sflag [#allocation4], %s470
          %s472 = sand.u32 %s119, 1
          %s473 = smul.addr %s472, 64
          %s474 = scalar_lea.vmem [#allocation8], %s473
          %475 = dma.done %s471, 1024
        $region56: #{tpu_custom_call.1} parent=51 // pred_fallthru
          _
      $region52: #{tpu_custom_call.1} parent=5 // pred_fallthru
        _
    $region6: #{tpu_custom_call.1} parent=1 // loop_footer
      %s20 = sadd.s32 1, %s16
    $region7: #{tpu_custom_call.1} parent=1 // loop_footer_branch
      %15 = sbr.rel target = $region3
    $region8: #{tpu_custom_call.1} parent=1 // loop_exit
      _
    %476 = vsyncpa [#allocation3], 1
    %s477 = scalar_lea.sflag [#allocation3], 1
    %478 = vsyncpa %s477, 1
    %479 = vsyncpa [#allocation6], 1
    %480 = vsyncpa [#allocation4], 1
    %s481 = scalar_lea.sflag [#allocation4], 1
    %482 = vsyncpa %s481, 1

</llo_original>
